<compile_context>
chip_gen: v7x
topology: tpu7x:2x2x1
jax: 0.10.0
libtpu: 0.0.40
codegen_flags: <defaults>
</compile_context>

<pallas_src>
import jax
import jax.numpy as jnp
from jax import lax
from jax.experimental import pallas as pl
from jax.experimental.pallas import tpu as pltpu


_ROW_CHUNK = 256  # sublane-row chunk inside the kernel; bounds vreg live-set.


def _pmf_dot_kernel(u_ref, i_ref, out_ref):
    # u_ref / i_ref: (b_tile, K) gathered embedding rows — batch on sublanes,
    # K on lanes.  out_ref: (b_tile, 1) float32.
    bt = u_ref.shape[0]
    chunk = min(bt, _ROW_CHUNK)       # bt is a power-of-2 multiple of 128,
    n_chunks = bt // chunk            # so chunk always divides bt exactly.

    def body(c, carry):
        r0 = pl.multiple_of(c * chunk, chunk)
        u = u_ref[pl.ds(r0, chunk), :].astype(jnp.float32)
        v = i_ref[pl.ds(r0, chunk), :].astype(jnp.float32)
        # Lane (K) reduction -> (chunk, 1); output bytes are ~1/(2K) of input
        # bytes, so the narrow store is noise on this bandwidth-bound op.
        out_ref[pl.ds(r0, chunk), :] = jnp.sum(u * v, axis=-1, keepdims=True)
        return carry

    lax.fori_loop(0, n_chunks, body, 0, unroll=True)


def _round_up(x, m):
    return (x + m - 1) // m * m


def _pick_b_tile(k, itemsize, b):
    # Keep 2 inputs x 2 pipeline buffers under ~16 MiB of VMEM so the tile is
    # also safe on v7x (32 MiB scoped default / 64 MiB physical); v5e/v6e have
    # far more headroom.  VMEM lane footprint rounds K up to 128 lanes.
    budget = 16 * 1024 * 1024
    k_lanes = _round_up(max(k, 1), 128)
    b_ceil = _round_up(max(b, 1), 128)
    bt = 4096
    while bt > 128 and (4 * bt * k_lanes * itemsize > budget or bt > b_ceil):
        bt //= 2
    return bt


def pmf_forward(users_index, items_index, user_emb, item_emb):
    """Pallas implementation of PMF.forward: (U[users] * V[items]).sum(-1)."""
    B = users_index.shape[0]
    K = user_emb.shape[1]
    itemsize = jnp.dtype(user_emb.dtype).itemsize

    b_tile = _pick_b_tile(K, itemsize, B)
    b_pad = _round_up(max(B, b_tile), b_tile)
    # Guarantee >= 2 tiles when possible so both v7x TensorCores get work.
    if b_pad // b_tile < 2 and b_tile > 128:
        b_tile //= 2
        b_pad = _round_up(max(B, b_tile), b_tile)
    nb = b_pad // b_tile

    # Pad the *indices* (cheap) so the XLA gather directly emits (b_pad, K) in
    # the tables' native dtype — no transpose/pad pass over the (B, K) data.
    pad = b_pad - B
    u_idx = jnp.pad(users_index, (0, pad))
    i_idx = jnp.pad(items_index, (0, pad))
    u_rows = jnp.take(user_emb, u_idx, axis=0)   # (b_pad, K)
    i_rows = jnp.take(item_emb, i_idx, axis=0)   # (b_pad, K)

    out = pl.pallas_call(
        _pmf_dot_kernel,
        out_shape=jax.ShapeDtypeStruct((b_pad, 1), jnp.float32),
        grid=(nb,),
        in_specs=[
            pl.BlockSpec((b_tile, K), lambda i: (i, 0)),
            pl.BlockSpec((b_tile, K), lambda i: (i, 0)),
        ],
        out_specs=pl.BlockSpec((b_tile, 1), lambda i: (i, 0)),
        compiler_params=pltpu.CompilerParams(
            dimension_semantics=("parallel",)),
    )(u_rows, i_rows)

    return out[:B, 0]


def init_pmf_params(key, n_users, n_items, n_factors):
    """Deterministic synthetic init mirroring PMF.__init__ shapes/scales."""
    k_u, k_v, k_p = jax.random.split(key, 3)
    user_emb = 0.001 * jax.random.uniform(k_u, (n_users, n_factors), dtype=jnp.float32)
    item_emb = 0.001 * jax.random.uniform(k_v, (n_items, n_factors), dtype=jnp.float32)
    # P_para / Q_para exist in the module but are unused by forward();
    # created here only for shape fidelity.
    P_para = 0.001 * jax.random.uniform(k_p, (n_factors, 1), dtype=jnp.float32)
    Q_para = jnp.ones((n_factors, 1), dtype=jnp.float32)
    return user_emb, item_emb, P_para, Q_para


if __name__ == "__main__":
    # small shapes: M users, N items, K factors, batch B of (user, item) pairs
    M, N, K, B = 64, 48, 32, 8

    key = jax.random.PRNGKey(0)
    k_params, k_uidx, k_iidx = jax.random.split(key, 3)

    user_emb, item_emb, _, _ = init_pmf_params(k_params, M, N, K)

    users_index = jax.random.randint(k_uidx, (B,), 0, M, dtype=jnp.int32)
    items_index = jax.random.randint(k_iidx, (B,), 0, N, dtype=jnp.int32)

    r_h = pmf_forward(users_index, items_index, user_emb, item_emb)
    r_h = jax.block_until_ready(r_h)

    # pure-JAX reference for correctness
    r_ref = jnp.sum(user_emb[users_index] * item_emb[items_index], axis=1)
    assert r_h.shape == (B,)
    assert jnp.allclose(r_h, r_ref, rtol=1e-5, atol=1e-8)

    print("KERNEL_OK")
</pallas_src>

<mosaic_0001>
module attributes {stable_mosaic.version = 11 : i64} {
  func.func @_pmf_dot_kernel(%arg0: i32, %arg1: memref<128x32xf32, #tpu.memory_space<vmem>>, %arg2: memref<128x32xf32, #tpu.memory_space<vmem>>, %arg3: memref<128x1xf32, #tpu.memory_space<vmem>>) attributes {dimension_semantics = [#tpu.dimension_semantics<parallel>], iteration_bounds = array<i64: 1>, scalar_prefetch = 0 : i64, scratch_operands = 0 : i64, tpu.core_type = #tpu.core_type<tc>, window_params = [{transform_indices = @transform_0, window_bounds = array<i64: 128, 32>}, {transform_indices = @transform_1, window_bounds = array<i64: 128, 32>}, {transform_indices = @transform_2, window_bounds = array<i64: 128, 1>}]} {
    %c0_i32 = arith.constant 0 : i32
    %c128_i32 = arith.constant 128 : i32
    %0 = arith.muli %c0_i32, %c128_i32 : i32
    %1 = tpu.assume_multiple %0, 128 : i32
    %2 = arith.index_cast %1 : i32 to index
    %c0 = arith.constant 0 : index
    %3 = vector.load %arg1[%2, %c0] : memref<128x32xf32, #tpu.memory_space<vmem>>, vector<128x32xf32>
    %4 = arith.index_cast %1 : i32 to index
    %c0_0 = arith.constant 0 : index
    %5 = vector.load %arg2[%4, %c0_0] : memref<128x32xf32, #tpu.memory_space<vmem>>, vector<128x32xf32>
    %6 = arith.mulf %3, %5 : vector<128x32xf32>
    %cst = arith.constant dense<0.000000e+00> : vector<128xf32>
    %7 = vector.multi_reduction <add>, %6, %cst [1] : vector<128x32xf32> to vector<128xf32>
    %8 = vector.shape_cast %7 : vector<128xf32> to vector<128x1xf32>
    %9 = arith.index_cast %1 : i32 to index
    %c0_1 = arith.constant 0 : index
    %10 = vector.load %arg3[%9, %c0_1] : memref<128x1xf32, #tpu.memory_space<vmem>>, vector<128x1xf32>
    tpu.vector_store %arg3[%9, %c0_1], %8 {strides = array<i32>} : memref<128x1xf32, #tpu.memory_space<vmem>>, vector<128x1xf32>,
    %c1_i32 = arith.constant 1 : i32
    return
  }
  func.func @transform_0(%arg0: i32) -> (i32, i32) {
    %c0_i32 = arith.constant 0 : i32
    %c0_i32_0 = arith.constant 0 : i32
    return %arg0, %c0_i32 : i32, i32
  }
  func.func @transform_1(%arg0: i32) -> (i32, i32) {
    %c0_i32 = arith.constant 0 : i32
    %c0_i32_0 = arith.constant 0 : i32
    return %arg0, %c0_i32 : i32, i32
  }
  func.func @transform_2(%arg0: i32) -> (i32, i32) {
    %c0_i32 = arith.constant 0 : i32
    %c0_i32_0 = arith.constant 0 : i32
    return %arg0, %c0_i32 : i32, i32
  }
}

</mosaic_0001>

<llo_original>
// kernel: tpu_custom_call.1
$region0: #{tpu_custom_call.1}
  #allocation0 [shape = 'u32[]', space=smem, size = 0x4, offset = 0x4, fixed_abs, tag = 'smem constant byte address 0x4 - core index']
  #allocation1 [shape = 'u32[144,128]{1,0:T(1,128)}', space=vmem, size = 0x12000, scoped, tag = 'internal scratch']
  %s0 = inlined_call_operand.vmem [shape: f32[128,32], index: 0, kind: input, shape index: {}]
  %s1 = inlined_call_operand.vmem [shape: f32[128,32], index: 1, kind: input, shape index: {}]
  %s2 = inlined_call_operand.vmem [shape: f32[128,1], index: 2, kind: output, shape index: {}]
  %s3 = sld [smem:[#allocation0]]
  $region18: #{tpu_custom_call.1} parent=0
    _
  %s5 = ssub.s32 1, %s3
  %s6 = scalar_select 0, %s5, %s3
  // Predicated region
  $region2: #{tpu_custom_call.1} parent=0 // pred_check
    _
  $region3: #{tpu_custom_call.1} parent=0 // pred_check_branch
    %8 = sbr.rel (0) target = $region5
  $region4: #{tpu_custom_call.1} parent=0 // pred_region
    _
  $region5: #{tpu_custom_call.1} parent=0 // pred_fallthru
    _
  // Predicated region
  $region6: #{tpu_custom_call.1} parent=0 // pred_check
    _
  $region7: #{tpu_custom_call.1} parent=0 // pred_check_branch
    %10 = sbr.rel (0) target = $region9
  $region8: #{tpu_custom_call.1} parent=0 // pred_region
    _
  $region9: #{tpu_custom_call.1} parent=0 // pred_fallthru
    _
  %v11 = vld [vmem:[%s0] sm:$0xff]
  %v12 = vld [vmem:[%s0 + $0x8] sm:$0xff]
  %v13 = vld [vmem:[%s0 + $0x10] sm:$0xff]
  %v14 = vld [vmem:[%s0 + $0x18] sm:$0xff]
  %v15 = vld [vmem:[%s0 + $0x20] sm:$0xff]
  %v16 = vld [vmem:[%s0 + $0x28] sm:$0xff]
  %v17 = vld [vmem:[%s0 + $0x30] sm:$0xff]
  %v18 = vld [vmem:[%s0 + $0x38] sm:$0xff]
  %v19 = vld [vmem:[%s0 + $0x40] sm:$0xff]
  %v20 = vld [vmem:[%s0 + $0x48] sm:$0xff]
  %v21 = vld [vmem:[%s0 + $0x50] sm:$0xff]
  %v22 = vld [vmem:[%s0 + $0x58] sm:$0xff]
  %v23 = vld [vmem:[%s0 + $0x60] sm:$0xff]
  %v24 = vld [vmem:[%s0 + $0x68] sm:$0xff]
  %v25 = vld [vmem:[%s0 + $0x70] sm:$0xff]
  %v26 = vld [vmem:[%s0 + $0x78] sm:$0xff]
  %v27 = vld [vmem:[%s1] sm:$0xff]
  %v28 = vld [vmem:[%s1 + $0x8] sm:$0xff]
  %v29 = vld [vmem:[%s1 + $0x10] sm:$0xff]
  %v30 = vld [vmem:[%s1 + $0x18] sm:$0xff]
  %v31 = vld [vmem:[%s1 + $0x20] sm:$0xff]
  %v32 = vld [vmem:[%s1 + $0x28] sm:$0xff]
  %v33 = vld [vmem:[%s1 + $0x30] sm:$0xff]
  %v34 = vld [vmem:[%s1 + $0x38] sm:$0xff]
  %v35 = vld [vmem:[%s1 + $0x40] sm:$0xff]
  %v36 = vld [vmem:[%s1 + $0x48] sm:$0xff]
  %v37 = vld [vmem:[%s1 + $0x50] sm:$0xff]
  %v38 = vld [vmem:[%s1 + $0x58] sm:$0xff]
  %v39 = vld [vmem:[%s1 + $0x60] sm:$0xff]
  %v40 = vld [vmem:[%s1 + $0x68] sm:$0xff]
  %v41 = vld [vmem:[%s1 + $0x70] sm:$0xff]
  %v42 = vld [vmem:[%s1 + $0x78] sm:$0xff]
  %v43 = vmul.f32 %v11, %v27
  %v44 = vmul.f32 %v12, %v28
  %v45 = vmul.f32 %v13, %v29
  %v46 = vmul.f32 %v14, %v30
  %v47 = vmul.f32 %v15, %v31
  %v48 = vmul.f32 %v16, %v32
  %v49 = vmul.f32 %v17, %v33
  %v50 = vmul.f32 %v18, %v34
  %v51 = vmul.f32 %v19, %v35
  %v52 = vmul.f32 %v20, %v36
  %v53 = vmul.f32 %v21, %v37
  %v54 = vmul.f32 %v22, %v38
  %v55 = vmul.f32 %v23, %v39
  %v56 = vmul.f32 %v24, %v40
  %v57 = vmul.f32 %v25, %v41
  %v58 = vmul.f32 %v26, %v42
  %vm59 = vcmask 261120
  %v60 = vsel %vm59, %v43, 0.0
  %61 = vadd.xlane.f32.xlu0 %v60
  %v62 = vpop.xlane.xlu0 %61
  %v63 = vsel %vm59, %v44, 0.0
  %64 = vadd.xlane.f32.xlu0 %v63
  %v65 = vpop.xlane.xlu0 %64
  %v66 = vsel %vm59, %v45, 0.0
  %67 = vadd.xlane.f32.xlu0 %v66
  %v68 = vpop.xlane.xlu0 %67
  %v69 = vsel %vm59, %v46, 0.0
  %70 = vadd.xlane.f32.xlu0 %v69
  %v71 = vpop.xlane.xlu0 %70
  %v72 = vsel %vm59, %v47, 0.0
  %73 = vadd.xlane.f32.xlu0 %v72
  %v74 = vpop.xlane.xlu0 %73
  %v75 = vsel %vm59, %v48, 0.0
  %76 = vadd.xlane.f32.xlu0 %v75
  %v77 = vpop.xlane.xlu0 %76
  %v78 = vsel %vm59, %v49, 0.0
  %79 = vadd.xlane.f32.xlu0 %v78
  %v80 = vpop.xlane.xlu0 %79
  %v81 = vsel %vm59, %v50, 0.0
  %82 = vadd.xlane.f32.xlu0 %v81
  %v83 = vpop.xlane.xlu0 %82
  %v84 = vsel %vm59, %v51, 0.0
  %85 = vadd.xlane.f32.xlu0 %v84
  %v86 = vpop.xlane.xlu0 %85
  %v87 = vsel %vm59, %v52, 0.0
  %88 = vadd.xlane.f32.xlu0 %v87
  %v89 = vpop.xlane.xlu0 %88
  %v90 = vsel %vm59, %v53, 0.0
  %91 = vadd.xlane.f32.xlu0 %v90
  %v92 = vpop.xlane.xlu0 %91
  %v93 = vsel %vm59, %v54, 0.0
  %94 = vadd.xlane.f32.xlu0 %v93
  %v95 = vpop.xlane.xlu0 %94
  %v96 = vsel %vm59, %v55, 0.0
  %97 = vadd.xlane.f32.xlu0 %v96
  %v98 = vpop.xlane.xlu0 %97
  %v99 = vsel %vm59, %v56, 0.0
  %100 = vadd.xlane.f32.xlu0 %v99
  %v101 = vpop.xlane.xlu0 %100
  %v102 = vsel %vm59, %v57, 0.0
  %103 = vadd.xlane.f32.xlu0 %v102
  %v104 = vpop.xlane.xlu0 %103
  %v105 = vsel %vm59, %v58, 0.0
  %106 = vadd.xlane.f32.xlu0 %v105
  %v107 = vpop.xlane.xlu0 %106
  %vm108 = vcmask 7168
  %109 = vst.msk [vmem:[%s2] sm:$0xff] %vm108, %v62
  %110 = vst.msk [vmem:[%s2 + $0x8] sm:$0xff] %vm108, %v65
  %111 = vst.msk [vmem:[%s2 + $0x10] sm:$0xff] %vm108, %v68
  %112 = vst.msk [vmem:[%s2 + $0x18] sm:$0xff] %vm108, %v71
  %113 = vst.msk [vmem:[%s2 + $0x20] sm:$0xff] %vm108, %v74
  %114 = vst.msk [vmem:[%s2 + $0x28] sm:$0xff] %vm108, %v77
  %115 = vst.msk [vmem:[%s2 + $0x30] sm:$0xff] %vm108, %v80
  %116 = vst.msk [vmem:[%s2 + $0x38] sm:$0xff] %vm108, %v83
  %117 = vst.msk [vmem:[%s2 + $0x40] sm:$0xff] %vm108, %v86
  %118 = vst.msk [vmem:[%s2 + $0x48] sm:$0xff] %vm108, %v89
  %119 = vst.msk [vmem:[%s2 + $0x50] sm:$0xff] %vm108, %v92
  %120 = vst.msk [vmem:[%s2 + $0x58] sm:$0xff] %vm108, %v95
  %121 = vst.msk [vmem:[%s2 + $0x60] sm:$0xff] %vm108, %v98
  %122 = vst.msk [vmem:[%s2 + $0x68] sm:$0xff] %vm108, %v101
  %123 = vst.msk [vmem:[%s2 + $0x70] sm:$0xff] %vm108, %v104
  %124 = vst.msk [vmem:[%s2 + $0x78] sm:$0xff] %vm108, %v107
  // Predicated region
  $region10: #{tpu_custom_call.1} parent=0 // pred_check
    _
  $region11: #{tpu_custom_call.1} parent=0 // pred_check_branch
    %126 = sbr.rel (0) target = $region13
  $region12: #{tpu_custom_call.1} parent=0 // pred_region
    _
  $region13: #{tpu_custom_call.1} parent=0 // pred_fallthru
    _
  // Predicated region
  $region14: #{tpu_custom_call.1} parent=0 // pred_check
    _
  $region15: #{tpu_custom_call.1} parent=0 // pred_check_branch
    %128 = sbr.rel (0) target = $region17
  $region16: #{tpu_custom_call.1} parent=0 // pred_region
    _
  $region17: #{tpu_custom_call.1} parent=0 // pred_fallthru
    _

</llo_original>
